<compile_context>
chip_gen: v7x
topology: tpu7x:2x2x1
jax: 0.10.0
libtpu: 0.0.40
codegen_flags: <defaults>
</compile_context>

<pallas_src>
import numpy as np
import jax
import jax.numpy as jnp
from jax.experimental import pallas as pl
from jax.experimental.pallas import tpu as pltpu


def mygru_kernel(x_ref, h_ref, m_ref, wx_ref, wh_ref, b_ref, out_ref):
    H = m_ref.shape[-1]
    # One fused pre-activation for both gates: (Bb, 2H)
    z = (jnp.dot(x_ref[...], wx_ref[...], preferred_element_type=jnp.float32)
         + jnp.dot(h_ref[...], wh_ref[...], preferred_element_type=jnp.float32)
         + b_ref[...])
    rt = 1.0 / (1.0 + jnp.exp(-z[:, :H]))      # sigmoid gate
    h_r = jnp.tanh(z[:, H:])                   # candidate state
    out_ref[...] = (1.0 - rt) * h_r + rt * m_ref[...]


@jax.jit
def my_gru_forward(x, m, h, Wxr, Whr, br, Whx, Whh, bh):
    B, D = x.shape
    H = h.shape[-1]

    # Fuse the gate weights once at trace time (outside the kernel), so the
    # kernel sees a single (D, 2H) and a single (H, 2H) weight.
    Wx = jnp.concatenate([Wxr, Whx], axis=1)            # (D, 2H)
    Wh = jnp.concatenate([Whr, Whh], axis=1)            # (H, 2H)
    b = jnp.concatenate([br, bh]).reshape(1, 2 * H)     # (1, 2H)

    # Batch-parallel grid: blocks of 8 sublanes when possible (lets v7x's two
    # TensorCores split the batch); otherwise one full-batch block.
    block_b = 8 if (B % 8 == 0 and B > 8) else B
    grid = (B // block_b,)

    x_spec = pl.BlockSpec((block_b, D), lambda i: (i, 0))
    h_spec = pl.BlockSpec((block_b, H), lambda i: (i, 0))

    def full_spec(shape):
        return pl.BlockSpec(shape, lambda i: (0, 0))

    return pl.pallas_call(
        mygru_kernel,
        out_shape=jax.ShapeDtypeStruct((B, H), jnp.float32),
        grid=grid,
        in_specs=[x_spec, h_spec, h_spec,
                  full_spec((D, 2 * H)),
                  full_spec((H, 2 * H)),
                  full_spec((1, 2 * H))],
        out_specs=h_spec,
        compiler_params=pltpu.CompilerParams(
            dimension_semantics=("parallel",),
            vmem_limit_bytes=4 * 1024 * 1024),
    )(x, h, m, Wx, Wh, b)


def reference_forward(x, m, h, Wxr, Whr, br, Whx, Whh, bh):
    """Pure-JAX port of MyGRU.forward, for a correctness check."""
    rt = jax.nn.sigmoid(x @ Wxr + h @ Whr + br)
    h_r = jnp.tanh(x @ Whx + h @ Whh + bh)
    return (1.0 - rt) * h_r + rt * m


if __name__ == "__main__":
    B, D, D2, H = 2, 16, 8, 32   # batch, input_dim, input_dim2 (unused), hidden_dim

    key = jax.random.PRNGKey(0)
    ks = jax.random.split(key, 9)
    x   = jax.random.normal(ks[0], (B, D), jnp.float32)
    m   = jax.random.normal(ks[1], (B, H), jnp.float32)
    h   = jax.random.normal(ks[2], (B, H), jnp.float32)
    Wxr = 0.1 * jax.random.normal(ks[3], (D, H), jnp.float32)
    Whr = 0.1 * jax.random.normal(ks[4], (H, H), jnp.float32)
    br  = 0.1 * jax.random.normal(ks[5], (H,), jnp.float32)
    Whx = 0.1 * jax.random.normal(ks[6], (D, H), jnp.float32)
    Whh = 0.1 * jax.random.normal(ks[7], (H, H), jnp.float32)
    bh  = 0.1 * jax.random.normal(ks[8], (H,), jnp.float32)
    # Wxm / Whm / bm exist on the PyTorch module but are unused in forward().

    h_new = my_gru_forward(x, m, h, Wxr, Whr, br, Whx, Whh, bh)
    jax.block_until_ready(h_new)

    h_ref = reference_forward(x, m, h, Wxr, Whr, br, Whx, Whh, bh)
    if not np.allclose(np.asarray(h_new), np.asarray(h_ref), atol=2e-2, rtol=0):
        raise SystemExit("Pallas kernel does not match pure-JAX reference")

    assert h_new.shape == (B, H)
    print("KERNEL_OK")
</pallas_src>

<mosaic_0001>
module attributes {stable_mosaic.version = 11 : i64} {
  func.func @mygru_kernel(%arg0: i32, %arg1: memref<2x16xf32, #tpu.memory_space<vmem>>, %arg2: memref<2x32xf32, #tpu.memory_space<vmem>>, %arg3: memref<2x32xf32, #tpu.memory_space<vmem>>, %arg4: memref<16x64xf32, #tpu.memory_space<vmem>>, %arg5: memref<32x64xf32, #tpu.memory_space<vmem>>, %arg6: memref<1x64xf32, #tpu.memory_space<vmem>>, %arg7: memref<2x32xf32, #tpu.memory_space<vmem>>) attributes {dimension_semantics = [#tpu.dimension_semantics<parallel>], iteration_bounds = array<i64: 1>, scalar_prefetch = 0 : i64, scratch_operands = 0 : i64, tpu.core_type = #tpu.core_type<tc>, window_params = [{transform_indices = @transform_0, window_bounds = array<i64: 2, 16>}, {transform_indices = @transform_1, window_bounds = array<i64: 2, 32>}, {transform_indices = @transform_2, window_bounds = array<i64: 2, 32>}, {pipeline_mode = #tpu.pipeline_mode<synchronous>, transform_indices = @transform_3, window_bounds = array<i64: 16, 64>}, {pipeline_mode = #tpu.pipeline_mode<synchronous>, transform_indices = @transform_4, window_bounds = array<i64: 32, 64>}, {pipeline_mode = #tpu.pipeline_mode<synchronous>, transform_indices = @transform_5, window_bounds = array<i64: 1, 64>}, {transform_indices = @transform_6, window_bounds = array<i64: 2, 32>}]} {
    %c0 = arith.constant 0 : index
    %c0_0 = arith.constant 0 : index
    %0 = vector.load %arg1[%c0, %c0_0] : memref<2x16xf32, #tpu.memory_space<vmem>>, vector<2x16xf32>
    %c0_1 = arith.constant 0 : index
    %c0_2 = arith.constant 0 : index
    %1 = vector.load %arg4[%c0_1, %c0_2] : memref<16x64xf32, #tpu.memory_space<vmem>>, vector<16x64xf32>
    %cst = arith.constant dense<0.000000e+00> : vector<2x64xf32>
    %2 = tpu.matmul %0, %1, %cst {dimension_numbers = #tpu.dot_dimension_numbers<[1], [0], [0], [1], [0, 0, 1, 1], [], []>} : vector<2x16xf32>, vector<16x64xf32>, vector<2x64xf32> -> vector<2x64xf32>
    %c0_3 = arith.constant 0 : index
    %c0_4 = arith.constant 0 : index
    %3 = vector.load %arg2[%c0_3, %c0_4] : memref<2x32xf32, #tpu.memory_space<vmem>>, vector<2x32xf32>
    %c0_5 = arith.constant 0 : index
    %c0_6 = arith.constant 0 : index
    %4 = vector.load %arg5[%c0_5, %c0_6] : memref<32x64xf32, #tpu.memory_space<vmem>>, vector<32x64xf32>
    %cst_7 = arith.constant dense<0.000000e+00> : vector<2x64xf32>
    %5 = tpu.matmul %3, %4, %cst_7 {dimension_numbers = #tpu.dot_dimension_numbers<[1], [0], [0], [1], [0, 0, 1, 1], [], []>} : vector<2x32xf32>, vector<32x64xf32>, vector<2x64xf32> -> vector<2x64xf32>
    %6 = arith.addf %2, %5 : vector<2x64xf32>
    %c0_8 = arith.constant 0 : index
    %c0_9 = arith.constant 0 : index
    %7 = vector.load %arg6[%c0_8, %c0_9] : memref<1x64xf32, #tpu.memory_space<vmem>>, vector<1x64xf32>
    %8 = vector.broadcast %7 : vector<1x64xf32> to vector<2x64xf32>
    %9 = arith.addf %6, %8 : vector<2x64xf32>
    %10 = vector.extract_strided_slice %9 {offsets = [0, 0], sizes = [2, 32], strides = [1, 1]} : vector<2x64xf32> to vector<2x32xf32>
    %cst_10 = arith.constant 0.000000e+00 : f32
    %11 = vector.broadcast %cst_10 : f32 to vector<2x32xf32>
    %12 = arith.subf %11, %10 : vector<2x32xf32>
    %13 = math.exp %12 : vector<2x32xf32>
    %cst_11 = arith.constant 1.000000e+00 : f32
    %14 = vector.broadcast %cst_11 : f32 to vector<2x32xf32>
    %15 = arith.addf %14, %13 : vector<2x32xf32>
    %cst_12 = arith.constant 1.000000e+00 : f32
    %16 = vector.broadcast %cst_12 : f32 to vector<2x32xf32>
    %17 = arith.divf %16, %15 : vector<2x32xf32>
    %18 = vector.extract_strided_slice %9 {offsets = [0, 32], sizes = [2, 32], strides = [1, 1]} : vector<2x64xf32> to vector<2x32xf32>
    %19 = math.tanh %18 : vector<2x32xf32>
    %cst_13 = arith.constant 1.000000e+00 : f32
    %20 = vector.broadcast %cst_13 : f32 to vector<2x32xf32>
    %21 = arith.subf %20, %17 : vector<2x32xf32>
    %22 = arith.mulf %21, %19 : vector<2x32xf32>
    %c0_14 = arith.constant 0 : index
    %c0_15 = arith.constant 0 : index
    %23 = vector.load %arg3[%c0_14, %c0_15] : memref<2x32xf32, #tpu.memory_space<vmem>>, vector<2x32xf32>
    %24 = arith.mulf %17, %23 : vector<2x32xf32>
    %25 = arith.addf %22, %24 : vector<2x32xf32>
    %c0_16 = arith.constant 0 : index
    %c0_17 = arith.constant 0 : index
    %26 = vector.load %arg7[%c0_16, %c0_17] : memref<2x32xf32, #tpu.memory_space<vmem>>, vector<2x32xf32>
    tpu.vector_store %arg7[%c0_16, %c0_17], %25 {strides = array<i32>} : memref<2x32xf32, #tpu.memory_space<vmem>>, vector<2x32xf32>,
    return
  }
  func.func @transform_0(%arg0: i32) -> (i32, i32) {
    %c0_i32 = arith.constant 0 : i32
    %c0_i32_0 = arith.constant 0 : i32
    return %arg0, %c0_i32 : i32, i32
  }
  func.func @transform_1(%arg0: i32) -> (i32, i32) {
    %c0_i32 = arith.constant 0 : i32
    %c0_i32_0 = arith.constant 0 : i32
    return %arg0, %c0_i32 : i32, i32
  }
  func.func @transform_2(%arg0: i32) -> (i32, i32) {
    %c0_i32 = arith.constant 0 : i32
    %c0_i32_0 = arith.constant 0 : i32
    return %arg0, %c0_i32 : i32, i32
  }
  func.func @transform_3(%arg0: i32) -> (i32, i32) {
    %c0_i32 = arith.constant 0 : i32
    %c0_i32_0 = arith.constant 0 : i32
    %c0_i32_1 = arith.constant 0 : i32
    return %c0_i32, %c0_i32_0 : i32, i32
  }
  func.func @transform_4(%arg0: i32) -> (i32, i32) {
    %c0_i32 = arith.constant 0 : i32
    %c0_i32_0 = arith.constant 0 : i32
    %c0_i32_1 = arith.constant 0 : i32
    return %c0_i32, %c0_i32_0 : i32, i32
  }
  func.func @transform_5(%arg0: i32) -> (i32, i32) {
    %c0_i32 = arith.constant 0 : i32
    %c0_i32_0 = arith.constant 0 : i32
    %c0_i32_1 = arith.constant 0 : i32
    return %c0_i32, %c0_i32_0 : i32, i32
  }
  func.func @transform_6(%arg0: i32) -> (i32, i32) {
    %c0_i32 = arith.constant 0 : i32
    %c0_i32_0 = arith.constant 0 : i32
    return %arg0, %c0_i32 : i32, i32
  }
}

</mosaic_0001>

<llo_original>
// kernel: my_gru_forward.1
$region0: #{my_gru_forward.1}
  #allocation0 [shape = 'u32[]', space=smem, size = 0x4, offset = 0x4, fixed_abs, tag = 'smem constant byte address 0x4 - core index']
  #allocation1 [shape = 'u32[144,128]{1,0:T(1,128)}', space=vmem, size = 0x12000, scoped, tag = 'internal scratch']
  %s0 = inlined_call_operand.vmem [shape: f32[2,16], index: 0, kind: input, shape index: {}]
  %s1 = inlined_call_operand.vmem [shape: f32[2,32], index: 1, kind: input, shape index: {}]
  %s2 = inlined_call_operand.vmem [shape: f32[2,32], index: 2, kind: input, shape index: {}]
  %s3 = inlined_call_operand.vmem [shape: f32[16,64], index: 3, kind: input, shape index: {}]
  %s4 = inlined_call_operand.vmem [shape: f32[32,64], index: 4, kind: input, shape index: {}]
  %s5 = inlined_call_operand.vmem [shape: f32[1,64], index: 5, kind: input, shape index: {}]
  %s6 = inlined_call_operand.hbm [shape: f32[2,32], index: 6, kind: output, shape index: {}]
  %s7 = sld [smem:[#allocation0]]
  $region34: #{my_gru_forward.1} parent=0
    _
  %s9 = ssub.s32 1, %s7
  %s10 = scalar_select 0, %s9, %s7
  $region1: #{my_gru_forward.1} parent=0
    #allocation2 [shape = 'u8[1024]{0}', space=vmem, size = 0x400, scoped, tag = 'output window, operand 0, single buffered']
    #allocation3 [shape = 's32[1]{0}', space=sflag, size = 0x4, scoped, tag = 'scoped memory for my_gru_forward.1']
    %11 = vsyncpa [#allocation3], 0
    // Predicated region
    $region2: #{my_gru_forward.1} parent=1 // pred_check
      _
    $region3: #{my_gru_forward.1} parent=1 // pred_check_branch
      %13 = sbr.rel (0) target = $region5
    $region4: #{my_gru_forward.1} parent=1 // pred_region
      _
    $region5: #{my_gru_forward.1} parent=1 // pred_fallthru
      _
    // Predicated region
    $region6: #{my_gru_forward.1} parent=1 // pred_check
      _
    $region7: #{my_gru_forward.1} parent=1 // pred_check_branch
      %15 = sbr.rel (0) target = $region9
    $region8: #{my_gru_forward.1} parent=1 // pred_region
      _
    $region9: #{my_gru_forward.1} parent=1 // pred_fallthru
      _
    // Predicated region
    $region10: #{my_gru_forward.1} parent=1 // pred_check
      _
    $region11: #{my_gru_forward.1} parent=1 // pred_check_branch
      %17 = sbr.rel (0) target = $region13
    $region12: #{my_gru_forward.1} parent=1 // pred_region
      _
    $region13: #{my_gru_forward.1} parent=1 // pred_fallthru
      _
    // Predicated region
    $region14: #{my_gru_forward.1} parent=1 // pred_check
      _
    $region15: #{my_gru_forward.1} parent=1 // pred_check_branch
      %19 = sbr.rel (0) target = $region17
    $region16: #{my_gru_forward.1} parent=1 // pred_region
      _
    $region17: #{my_gru_forward.1} parent=1 // pred_fallthru
      _
    // Predicated region
    $region18: #{my_gru_forward.1} parent=1 // pred_check
      _
    $region19: #{my_gru_forward.1} parent=1 // pred_check_branch
      %21 = sbr.rel (0) target = $region21
    $region20: #{my_gru_forward.1} parent=1 // pred_region
      _
    $region21: #{my_gru_forward.1} parent=1 // pred_fallthru
      _
    // Predicated region
    $region22: #{my_gru_forward.1} parent=1 // pred_check
      _
    $region23: #{my_gru_forward.1} parent=1 // pred_check_branch
      %23 = sbr.rel (0) target = $region25
    $region24: #{my_gru_forward.1} parent=1 // pred_region
      _
    $region25: #{my_gru_forward.1} parent=1 // pred_fallthru
      _
    %v24 = vld [vmem:[%s0] sm:$0x3]
    %v25 = vld [vmem:[%s3] sm:$0xff]
    %v26 = vld [vmem:[%s3 + $0x8] sm:$0xff]
    %v27 = vld [vmem:[%s1] sm:$0x3]
    %v28 = vld [vmem:[%s4] sm:$0xff]
    %v29 = vld [vmem:[%s4 + $0x8] sm:$0xff]
    %v30 = vld [vmem:[%s4 + $0x10] sm:$0xff]
    %v31 = vld [vmem:[%s4 + $0x18] sm:$0xff]
    %vm32 = vcmask 261120
    %v34 = vsel %vm32, %v27, 0
    %36 = vmatprep.subr.mxu0 0.0
    %37 = vmatpush1.msra.mxu0 %v28
    %38 = vmatprep.subr.mxu0 0.0
    %39 = vmatpush1.msra.mxu0 %v29
    %40 = vmatprep.subr.mxu0 0.0
    %41 = vmatpush1.msra.mxu0 %v30
    %42 = vmatprep.subr.mxu0 0.0
    %43 = vmatpush1.msra.mxu0 %v31
    %44 = vmatprep.subr.mxu0 0.0
    %45 = vmatpush1.msra.mxu0 0.0
    %46 = vmatprep.subr.mxu0 0.0
    %47 = vmatpush1.msra.mxu0 0.0
    %48 = vmatprep.subr.mxu0 0.0
    %49 = vmatpush1.msra.mxu0 0.0
    %50 = vmatprep.subr.mxu0 0.0
    %51 = vmatpush1.msra.mxu0 0.0
    %52 = vmatprep.subr.mxu0 0.0
    %53 = vmatpush1.msra.mxu0 0.0
    %54 = vmatprep.subr.mxu0 0.0
    %55 = vmatpush1.msra.mxu0 0.0
    %56 = vmatprep.subr.mxu0 0.0
    %57 = vmatpush1.msra.mxu0 0.0
    %58 = vmatprep.subr.mxu0 0.0
    %59 = vmatpush1.msra.mxu0 0.0
    %60 = vmatprep.subr.mxu0 0.0
    %61 = vmatpush1.msra.mxu0 0.0
    %62 = vmatprep.subr.mxu0 0.0
    %63 = vmatpush1.msra.mxu0 0.0
    %64 = vmatprep.subr.mxu0 0.0
    %65 = vmatpush1.msra.mxu0 0.0
    %66 = vmatprep.subr.mxu0 0.0
    %67 = vmatpush1.msra.mxu0 0.0
    %68 = vmatprep.subr.mxu0 0.0
    %69 = vmatpush1.msra.mxu0 0.0
    %70 = vmatprep.subr.mxu0 0.0
    %71 = vmatpush1.msra.mxu0 0.0
    %72 = vmatprep.subr.mxu0 0.0
    %73 = vmatpush1.msra.mxu0 0.0
    %74 = vmatprep.subr.mxu0 0.0
    %75 = vmatpush1.msra.mxu0 0.0
    %76 = vmatprep.subr.mxu0 0.0
    %77 = vmatpush1.msra.mxu0 0.0
    %78 = vmatprep.subr.mxu0 0.0
    %79 = vmatpush1.msra.mxu0 0.0
    %80 = vmatprep.subr.mxu0 0.0
    %81 = vmatpush1.msra.mxu0 0.0
    %82 = vmatprep.subr.mxu0 0.0
    %83 = vmatpush1.msra.mxu0 0.0
    %84 = vmatprep.subr.mxu0 0.0
    %85 = vmatpush1.msra.mxu0 0.0
    %86 = vmatprep.subr.mxu0 0.0
    %87 = vmatpush1.msra.mxu0 0.0
    %88 = vmatprep.subr.mxu0 0.0
    %89 = vmatpush1.msra.mxu0 0.0
    %90 = vmatprep.subr.mxu0 0.0
    %91 = vmatpush1.msra.mxu0 0.0
    %92 = vmatprep.subr.mxu0 0.0
    %93 = vmatpush1.msra.mxu0 0.0
    %94 = vmatprep.subr.mxu0 0.0
    %95 = vmatpush1.msra.mxu0 0.0
    %96 = vmatprep.subr.mxu0 0.0
    %97 = vmatpush1.msra.mxu0 0.0
    %98 = vmatprep.subr.mxu0 0.0
    %99 = vmatpush1.msra.mxu0 0.0
    %100 = vmatprep.mubr.f32.mxu0 0.0
    %101 = vmatmul.mubr.f32.gmra.mrb[0].mxu0 %v34
    %v102 = vpop.f32.mrb[0].mxu0
    %v103 = vadd.f32 0.0, %v102
    %v104 = vpop.f32.mrb[0].mxu0
    %105 = vdwg.mxu0
    %vm106 = vcmask 130048
    %v108 = vsel %vm106, %v24, 0
    %110 = vmatprep.subr.mxu0 0.0
    %111 = vmatpush1.msra.mxu0 %v25
    %112 = vmatprep.subr.mxu0 0.0
    %113 = vmatpush1.msra.mxu0 %v26
    %114 = vmatprep.subr.mxu0 0.0
    %115 = vmatpush1.msra.mxu0 0.0
    %116 = vmatprep.subr.mxu0 0.0
    %117 = vmatpush1.msra.mxu0 0.0
    %118 = vmatprep.subr.mxu0 0.0
    %119 = vmatpush1.msra.mxu0 0.0
    %120 = vmatprep.subr.mxu0 0.0
    %121 = vmatpush1.msra.mxu0 0.0
    %122 = vmatprep.subr.mxu0 0.0
    %123 = vmatpush1.msra.mxu0 0.0
    %124 = vmatprep.subr.mxu0 0.0
    %125 = vmatpush1.msra.mxu0 0.0
    %126 = vmatprep.subr.mxu0 0.0
    %127 = vmatpush1.msra.mxu0 0.0
    %128 = vmatprep.subr.mxu0 0.0
    %129 = vmatpush1.msra.mxu0 0.0
    %130 = vmatprep.subr.mxu0 0.0
    %131 = vmatpush1.msra.mxu0 0.0
    %132 = vmatprep.subr.mxu0 0.0
    %133 = vmatpush1.msra.mxu0 0.0
    %134 = vmatprep.subr.mxu0 0.0
    %135 = vmatpush1.msra.mxu0 0.0
    %136 = vmatprep.subr.mxu0 0.0
    %137 = vmatpush1.msra.mxu0 0.0
    %138 = vmatprep.subr.mxu0 0.0
    %139 = vmatpush1.msra.mxu0 0.0
    %140 = vmatprep.subr.mxu0 0.0
    %141 = vmatpush1.msra.mxu0 0.0
    %142 = vmatprep.subr.mxu0 0.0
    %143 = vmatpush1.msra.mxu0 0.0
    %144 = vmatprep.subr.mxu0 0.0
    %145 = vmatpush1.msra.mxu0 0.0
    %146 = vmatprep.subr.mxu0 0.0
    %147 = vmatpush1.msra.mxu0 0.0
    %148 = vmatprep.subr.mxu0 0.0
    %149 = vmatpush1.msra.mxu0 0.0
    %150 = vmatprep.subr.mxu0 0.0
    %151 = vmatpush1.msra.mxu0 0.0
    %152 = vmatprep.subr.mxu0 0.0
    %153 = vmatpush1.msra.mxu0 0.0
    %154 = vmatprep.subr.mxu0 0.0
    %155 = vmatpush1.msra.mxu0 0.0
    %156 = vmatprep.subr.mxu0 0.0
    %157 = vmatpush1.msra.mxu0 0.0
    %158 = vmatprep.subr.mxu0 0.0
    %159 = vmatpush1.msra.mxu0 0.0
    %160 = vmatprep.subr.mxu0 0.0
    %161 = vmatpush1.msra.mxu0 0.0
    %162 = vmatprep.subr.mxu0 0.0
    %163 = vmatpush1.msra.mxu0 0.0
    %164 = vmatprep.subr.mxu0 0.0
    %165 = vmatpush1.msra.mxu0 0.0
    %166 = vmatprep.subr.mxu0 0.0
    %167 = vmatpush1.msra.mxu0 0.0
    %168 = vmatprep.subr.mxu0 0.0
    %169 = vmatpush1.msra.mxu0 0.0
    %170 = vmatprep.subr.mxu0 0.0
    %171 = vmatpush1.msra.mxu0 0.0
    %172 = vmatprep.subr.mxu0 0.0
    %173 = vmatpush1.msra.mxu0 0.0
    %174 = vmatprep.mubr.f32.mxu0 0.0
    %175 = vmatmul.mubr.f32.gmra.mrb[0].mxu0 %v108
    %v176 = vpop.f32.mrb[0].mxu0
    %v177 = vadd.f32 %v103, %v176
    %v178 = vpop.f32.mrb[0].mxu0
    %179 = vdwg.mxu0
    %v180 = vld [vmem:[%s5] sm:$0x1]
    %v182 = vlaneseq
    %v183 = vshrl.u32 %v182, 7
    %v184 = vsub.s32 0, %v183
    %v185 = vrot.slane %v180, %v184
    %v187 = vadd.f32 %v177, %v185
    %v188 = vsub.f32 0.0, %v187
    %v189 = vmul.f32 %v188, 1.442695
    %v190 = vpow.pop %v189
    %v191 = vadd.f32 %v190, 1.0
    %v192 = vrcp.pop %v191
    %v193 = vmul.f32 1.0, %v192
    %v194 = vtanh.pop %v187
    %v195 = vsub.f32 1.0, %v193
    %197 = vrot.lane.b32.xlu0 %v194, 96
    %v198 = vpop.permute.xlu0 %197
    %v200 = vmul.f32 %v195, %v198
    %v201 = vld [vmem:[%s2] sm:$0x3]
    %v202 = vmul.f32 %v193, %v201
    %v203 = vadd.f32 %v200, %v202
    %vm204 = vcmask 254976
    %205 = vst.msk [vmem:[#allocation2] sm:$0x3] %vm204, %v203
    // Predicated region
    $region26: #{my_gru_forward.1} parent=1 // pred_check
      _
    $region27: #{my_gru_forward.1} parent=1 // pred_check_branch
      %207 = sbr.rel (0) target = $region29
    $region28: #{my_gru_forward.1} parent=1 // pred_region
      %s209 = ssub.s32 32, 32
      %210 = vsyncadd [#allocation3], %s209
      %s212 = sshll.u32 [#allocation2], 4
      %s213 = int_to_ptr.vmem [resolvable:$true] %s212
      %215 = dma.vmem_to_hbm [thread:$0]  %s213, 32, %s6, [#allocation3]
    $region29: #{my_gru_forward.1} parent=1 // pred_fallthru
      _
    // Predicated region
    $region30: #{my_gru_forward.1} parent=1 // pred_check
      _
    $region31: #{my_gru_forward.1} parent=1 // pred_check_branch
      %217 = sbr.rel (0) target = $region33
    $region32: #{my_gru_forward.1} parent=1 // pred_region
      %218 = dma.done [#allocation3], 32
    $region33: #{my_gru_forward.1} parent=1 // pred_fallthru
      _
    %219 = vsyncpa [#allocation3], 1

</llo_original>
